<compile_context>
chip_gen: v7x
topology: tpu7x:2x2x1
jax: 0.10.0
libtpu: 0.0.40
codegen_flags: <defaults>
</compile_context>

<pallas_src>
import jax
import jax.numpy as jnp
from jax.experimental import pallas as pl
from jax.experimental.pallas import tpu as pltpu


# ----------------------------------------------------------------------------
# Kernels
# ----------------------------------------------------------------------------
def _layernorm_kernel(eps):
    """General path: one logical row per tile row (lane width = H)."""
    def kernel(x_ref, g_ref, b_ref, o_ref):
        x = x_ref[...].astype(jnp.float32)                 # (T, H)
        h = x.shape[-1]
        mean = jnp.mean(x, axis=-1, keepdims=True)
        diff = x - mean
        # PyTorch x.std(-1): unbiased (divide by H-1); eps added to the std.
        var = jnp.sum(diff * diff, axis=-1, keepdims=True) / (h - 1)
        inv = pl.reciprocal(jnp.sqrt(var) + eps, approx=False)
        o_ref[...] = (g_ref[...] * (diff * inv) + b_ref[...]).astype(o_ref.dtype)
    return kernel


def _layernorm_packed_kernel(eps, h):
    """Lane-dense path for H < 128: 128/H rows packed per lane row.

    Per-segment sums use the MXU with a block-diagonal ones matrix.  Each
    operand is split into bf16 hi/lo parts so the result keeps ~f32 accuracy
    even if the underlying matmul runs at bf16 precision.
    """
    inv_h = 1.0 / float(h)
    inv_hm1 = 1.0 / float(h - 1)

    def _seg_sum(a_f32, seg_mat):
        a_hi = a_f32.astype(jnp.bfloat16)
        a_lo = (a_f32 - a_hi.astype(jnp.float32)).astype(jnp.bfloat16)
        return (jnp.dot(a_hi, seg_mat, preferred_element_type=jnp.float32)
                + jnp.dot(a_lo, seg_mat, preferred_element_type=jnp.float32))

    def kernel(x_ref, g_ref, b_ref, seg_ref, o_ref):
        x = x_ref[...].astype(jnp.float32)                 # (T, 128) lane-dense
        s = seg_ref[...]                                   # (128,128) block-diag of 1s (bf16)
        mean = _seg_sum(x, s) * inv_h                      # per-segment mean (broadcast)
        diff = x - mean
        var = _seg_sum(diff * diff, s) * inv_hm1           # unbiased, like torch .std()
        inv = pl.reciprocal(jnp.sqrt(var) + eps, approx=False)
        o_ref[...] = (g_ref[...] * (diff * inv) + b_ref[...]).astype(o_ref.dtype)
    return kernel


# ----------------------------------------------------------------------------
# Tiling heuristics
# ----------------------------------------------------------------------------
def _tpu_targets():
    """(target input-block bytes, VMEM budget bytes), per chip generation."""
    try:
        vmem = int(pltpu.get_tpu_info().vmem_capacity_bytes)
    except Exception:
        vmem = 0
    if vmem >= 100 * 1024 * 1024:            # v5e / v6e: 128 MiB physical VMEM
        return 2 * 1024 * 1024, 96 * 1024 * 1024
    if vmem >= 48 * 1024 * 1024:             # v7x-class: 64 MiB VMEM, 3.2 TB/s HBM
        return 4 * 1024 * 1024, 48 * 1024 * 1024
    # Unknown chip / query failed: settings that are safe everywhere.
    return 2 * 1024 * 1024, 40 * 1024 * 1024


def _pick_tile_rows(n_rows, lane_width, in_itemsize, target_block_bytes, vmem_budget):
    """Largest sublane-aligned row tile under the DMA-byte and VMEM caps."""
    sublane = max(8, 32 // in_itemsize)      # 8 f32, 16 bf16, 32 int8/fp8
    row_in = lane_width * in_itemsize
    row_f32 = lane_width * 4
    # Double-buffered input + double-buffered output (input dtype) plus ~4 live
    # f32 temporaries in the body: the f32 upcast, not the input itemsize,
    # dominates the footprint for sub-32-bit dtypes.
    per_row_vmem = 4 * row_in + 4 * row_f32

    by_dma = max(sublane, target_block_bytes // row_in)
    by_vmem = max(sublane, (vmem_budget - 2 * 1024 * 1024) // per_row_vmem)
    # Keep >= ~8 grid steps when there is enough work (pipeline depth and
    # sharding across both v7x TensorCores); never exceed the problem size.
    by_steps = max(sublane, pl.cdiv(n_rows, 8))

    tile = min(by_dma, by_vmem, by_steps, max(sublane, n_rows))
    tile = max(sublane, (tile // sublane) * sublane)

    # Prefer an even grid (v7x shards the single 'parallel' axis over 2 TCs).
    grid = pl.cdiv(n_rows, tile)
    if grid > 1 and grid % 2 == 1:
        alt = -(-pl.cdiv(n_rows, grid + 1) // sublane) * sublane
        if alt >= sublane and pl.cdiv(n_rows, alt) % 2 == 0:
            tile = alt
    return int(tile)


# ----------------------------------------------------------------------------
# Wrapper
# ----------------------------------------------------------------------------
def layer_norm_pallas(x, gamma, beta, eps=1e-12, tile_rows=None):
    """x: (..., H).  gamma, beta: (H,).  Returns same shape/dtype as x."""
    orig_shape = x.shape
    H = orig_shape[-1]
    x2 = x.reshape(-1, H)
    R = x2.shape[0]
    itemsize = jnp.dtype(x.dtype).itemsize

    g_f32 = gamma.astype(jnp.float32)
    b_f32 = beta.astype(jnp.float32)

    target_block_bytes, vmem_budget = _tpu_targets()

    # Lane-dense packing for narrow last dims (store path is the big lever).
    pack = 1
    if 1 < H < 128 and 128 % H == 0 and R % (128 // H) == 0:
        pack = 128 // H

    if pack > 1:
        W = 128
        Rp = R // pack
        x_in = x2.reshape(Rp, W)              # contiguous reshape: no HBM copy
        g_in = jnp.tile(g_f32, pack).reshape(1, W)
        b_in = jnp.tile(b_f32, pack).reshape(1, W)
        seg = jnp.arange(W, dtype=jnp.int32) // H
        seg_mat = (seg[:, None] == seg[None, :]).astype(jnp.bfloat16)
        kernel = _layernorm_packed_kernel(eps, H)
        extra_inputs = [seg_mat]
        extra_specs = [pl.BlockSpec((W, W), lambda i: (0, 0))]
    else:
        W = H
        Rp = R
        x_in = x2
        g_in = g_f32.reshape(1, H)
        b_in = b_f32.reshape(1, H)
        kernel = _layernorm_kernel(eps)
        extra_inputs = []
        extra_specs = []

    if tile_rows is None:
        tile_rows = _pick_tile_rows(Rp, W, itemsize, target_block_bytes, vmem_budget)

    grid = pl.cdiv(Rp, tile_rows)             # partial last block; no padding

    in_block = tile_rows * W * itemsize
    f32_block = tile_rows * W * 4
    vmem_need = 4 * in_block + 4 * f32_block + (1 << 20)
    vmem_limit = int(min(vmem_budget, max(16 * 1024 * 1024, vmem_need)))

    out = pl.pallas_call(
        kernel,
        out_shape=jax.ShapeDtypeStruct((Rp, W), x.dtype),
        grid_spec=pltpu.PrefetchScalarGridSpec(
            num_scalar_prefetch=0,
            grid=(grid,),
            in_specs=[
                pl.BlockSpec((tile_rows, W), lambda i: (i, 0)),
                pl.BlockSpec((1, W), lambda i: (0, 0)),
                pl.BlockSpec((1, W), lambda i: (0, 0)),
            ] + extra_specs,
            out_specs=pl.BlockSpec((tile_rows, W), lambda i: (i, 0)),
        ),
        compiler_params=pltpu.CompilerParams(
            dimension_semantics=("parallel",),
            vmem_limit_bytes=vmem_limit),
    )(x_in, g_in, b_in, *extra_inputs)

    return out.reshape(orig_shape)


# ----------------------------------------------------------------------------
# Demo / correctness check
# ----------------------------------------------------------------------------
if __name__ == "__main__":
    def ref_ln(x, g, b, eps):
        mean = jnp.mean(x, axis=-1, keepdims=True)
        std = jnp.sqrt(jnp.sum((x - mean) ** 2, axis=-1, keepdims=True)
                       / (x.shape[-1] - 1))
        return g * ((x - mean) / (std + eps)) + b

    key = jax.random.PRNGKey(0)
    batch, seq, hid = 2, 8, 32

    x = jax.random.normal(key, (batch, seq, hid), dtype=jnp.float32)
    gamma = jnp.ones((hid,), dtype=jnp.float32)   # nn.Parameter(torch.ones(hid))
    beta = jnp.zeros((hid,), dtype=jnp.float32)   # nn.Parameter(torch.zeros(hid))

    # Packed (lane-dense) path: H=32 < 128, rows pack 4-per-lane-row.
    y = jax.block_until_ready(layer_norm_pallas(x, gamma, beta, eps=1e-12))
    assert jnp.allclose(y, ref_ln(x, gamma, beta, 1e-12), atol=1e-5, rtol=1e-5)

    # Non-divisible row count -> plain path + un-padded partial boundary block.
    x_odd = jax.random.normal(jax.random.PRNGKey(1), (3, 5, hid), dtype=jnp.float32)
    y_odd = jax.block_until_ready(layer_norm_pallas(x_odd, gamma, beta, eps=1e-12))
    assert jnp.allclose(y_odd, ref_ln(x_odd, gamma, beta, 1e-12),
                        atol=1e-5, rtol=1e-5)

    print("KERNEL_OK")
</pallas_src>

<mosaic_0001>
module attributes {stable_mosaic.version = 11 : i64} {
  func.func @kernel(%arg0: i32, %arg1: memref<8x128xf32, #tpu.memory_space<vmem>>, %arg2: memref<1x128xf32, #tpu.memory_space<vmem>>, %arg3: memref<1x128xf32, #tpu.memory_space<vmem>>, %arg4: memref<128x128xbf16, #tpu.memory_space<vmem>>, %arg5: memref<8x128xf32, #tpu.memory_space<vmem>>) attributes {dimension_semantics = [#tpu.dimension_semantics<parallel>], iteration_bounds = array<i64: 1>, scalar_prefetch = 0 : i64, scratch_operands = 0 : i64, tpu.core_type = #tpu.core_type<tc>, window_params = [{transform_indices = @transform_0, window_bounds = array<i64: 8, 128>}, {pipeline_mode = #tpu.pipeline_mode<synchronous>, transform_indices = @transform_1, window_bounds = array<i64: 1, 128>}, {pipeline_mode = #tpu.pipeline_mode<synchronous>, transform_indices = @transform_2, window_bounds = array<i64: 1, 128>}, {pipeline_mode = #tpu.pipeline_mode<synchronous>, transform_indices = @transform_3, window_bounds = array<i64: 128, 128>}, {transform_indices = @transform_4, window_bounds = array<i64: 8, 128>}]} {
    %c0 = arith.constant 0 : index
    %c0_0 = arith.constant 0 : index
    %0 = vector.load %arg1[%c0, %c0_0] : memref<8x128xf32, #tpu.memory_space<vmem>>, vector<8x128xf32>
    %c0_1 = arith.constant 0 : index
    %c0_2 = arith.constant 0 : index
    %1 = vector.load %arg4[%c0_1, %c0_2] : memref<128x128xbf16, #tpu.memory_space<vmem>>, vector<128x128xbf16>
    %2 = arith.truncf %0 : vector<8x128xf32> to vector<8x128xbf16>
    %3 = arith.extf %2 : vector<8x128xbf16> to vector<8x128xf32>
    %4 = arith.subf %0, %3 : vector<8x128xf32>
    %5 = arith.truncf %4 : vector<8x128xf32> to vector<8x128xbf16>
    %cst = arith.constant dense<0.000000e+00> : vector<8x128xf32>
    %6 = tpu.matmul %2, %1, %cst {dimension_numbers = #tpu.dot_dimension_numbers<[1], [0], [0], [1], [0, 0, 1, 1], [], []>} : vector<8x128xbf16>, vector<128x128xbf16>, vector<8x128xf32> -> vector<8x128xf32>
    %cst_3 = arith.constant dense<0.000000e+00> : vector<8x128xf32>
    %7 = tpu.matmul %5, %1, %cst_3 {dimension_numbers = #tpu.dot_dimension_numbers<[1], [0], [0], [1], [0, 0, 1, 1], [], []>} : vector<8x128xbf16>, vector<128x128xbf16>, vector<8x128xf32> -> vector<8x128xf32>
    %8 = arith.addf %6, %7 : vector<8x128xf32>
    %cst_4 = arith.constant 3.125000e-02 : f32
    %9 = vector.broadcast %cst_4 : f32 to vector<8x128xf32>
    %10 = arith.mulf %8, %9 : vector<8x128xf32>
    %11 = arith.subf %0, %10 : vector<8x128xf32>
    %12 = arith.mulf %11, %11 : vector<8x128xf32>
    %13 = arith.truncf %12 : vector<8x128xf32> to vector<8x128xbf16>
    %14 = arith.extf %13 : vector<8x128xbf16> to vector<8x128xf32>
    %15 = arith.subf %12, %14 : vector<8x128xf32>
    %16 = arith.truncf %15 : vector<8x128xf32> to vector<8x128xbf16>
    %cst_5 = arith.constant dense<0.000000e+00> : vector<8x128xf32>
    %17 = tpu.matmul %13, %1, %cst_5 {dimension_numbers = #tpu.dot_dimension_numbers<[1], [0], [0], [1], [0, 0, 1, 1], [], []>} : vector<8x128xbf16>, vector<128x128xbf16>, vector<8x128xf32> -> vector<8x128xf32>
    %cst_6 = arith.constant dense<0.000000e+00> : vector<8x128xf32>
    %18 = tpu.matmul %16, %1, %cst_6 {dimension_numbers = #tpu.dot_dimension_numbers<[1], [0], [0], [1], [0, 0, 1, 1], [], []>} : vector<8x128xbf16>, vector<128x128xbf16>, vector<8x128xf32> -> vector<8x128xf32>
    %19 = arith.addf %17, %18 : vector<8x128xf32>
    %cst_7 = arith.constant 0.0322580636 : f32
    %20 = vector.broadcast %cst_7 : f32 to vector<8x128xf32>
    %21 = arith.mulf %19, %20 : vector<8x128xf32>
    %22 = math.sqrt %21 : vector<8x128xf32>
    %cst_8 = arith.constant 9.99999996E-13 : f32
    %23 = vector.broadcast %cst_8 : f32 to vector<8x128xf32>
    %24 = arith.addf %22, %23 : vector<8x128xf32>
    %25 = tpu.reciprocal %24 : vector<8x128xf32> -> vector<8x128xf32>
    %c0_9 = arith.constant 0 : index
    %c0_10 = arith.constant 0 : index
    %26 = vector.load %arg2[%c0_9, %c0_10] : memref<1x128xf32, #tpu.memory_space<vmem>>, vector<1x128xf32>
    %27 = arith.mulf %11, %25 : vector<8x128xf32>
    %28 = vector.broadcast %26 : vector<1x128xf32> to vector<8x128xf32>
    %29 = arith.mulf %28, %27 : vector<8x128xf32>
    %c0_11 = arith.constant 0 : index
    %c0_12 = arith.constant 0 : index
    %30 = vector.load %arg3[%c0_11, %c0_12] : memref<1x128xf32, #tpu.memory_space<vmem>>, vector<1x128xf32>
    %31 = vector.broadcast %30 : vector<1x128xf32> to vector<8x128xf32>
    %32 = arith.addf %29, %31 : vector<8x128xf32>
    %c0_13 = arith.constant 0 : index
    %c0_14 = arith.constant 0 : index
    %33 = vector.load %arg5[%c0_13, %c0_14] : memref<8x128xf32, #tpu.memory_space<vmem>>, vector<8x128xf32>
    tpu.vector_store %arg5[%c0_13, %c0_14], %32 {strides = array<i32>} : memref<8x128xf32, #tpu.memory_space<vmem>>, vector<8x128xf32>,
    return
  }
  func.func @transform_0(%arg0: i32) -> (i32, i32) {
    %c0_i32 = arith.constant 0 : i32
    %c0_i32_0 = arith.constant 0 : i32
    return %arg0, %c0_i32 : i32, i32
  }
  func.func @transform_1(%arg0: i32) -> (i32, i32) {
    %c0_i32 = arith.constant 0 : i32
    %c0_i32_0 = arith.constant 0 : i32
    %c0_i32_1 = arith.constant 0 : i32
    return %c0_i32, %c0_i32_0 : i32, i32
  }
  func.func @transform_2(%arg0: i32) -> (i32, i32) {
    %c0_i32 = arith.constant 0 : i32
    %c0_i32_0 = arith.constant 0 : i32
    %c0_i32_1 = arith.constant 0 : i32
    return %c0_i32, %c0_i32_0 : i32, i32
  }
  func.func @transform_3(%arg0: i32) -> (i32, i32) {
    %c0_i32 = arith.constant 0 : i32
    %c0_i32_0 = arith.constant 0 : i32
    %c0_i32_1 = arith.constant 0 : i32
    return %c0_i32, %c0_i32_0 : i32, i32
  }
  func.func @transform_4(%arg0: i32) -> (i32, i32) {
    %c0_i32 = arith.constant 0 : i32
    %c0_i32_0 = arith.constant 0 : i32
    return %arg0, %c0_i32 : i32, i32
  }
}

</mosaic_0001>

<llo_original>
// kernel: tpu_custom_call.1
$region0: #{tpu_custom_call.1}
  #allocation0 [shape = 'u32[]', space=smem, size = 0x4, offset = 0x4, fixed_abs, tag = 'smem constant byte address 0x4 - core index']
  #allocation1 [shape = 'u32[144,128]{1,0:T(1,128)}', space=vmem, size = 0x12000, scoped, tag = 'internal scratch']
  %s0 = inlined_call_operand.hbm [shape: f32[4,128], index: 0, kind: input, shape index: {}]
  %s1 = inlined_call_operand.vmem [shape: f32[1,128], index: 1, kind: input, shape index: {}]
  %s2 = inlined_call_operand.vmem [shape: f32[1,128], index: 2, kind: input, shape index: {}]
  %s3 = inlined_call_operand.hbm [shape: bf16[128,128], index: 3, kind: input, shape index: {}]
  %s4 = inlined_call_operand.hbm [shape: f32[4,128], index: 4, kind: output, shape index: {}]
  %s5 = sld [smem:[#allocation0]]
  $region34: #{tpu_custom_call.1} parent=0
    _
  %s7 = ssub.s32 1, %s5
  %s8 = scalar_select 0, %s7, %s5
  $region1: #{tpu_custom_call.1} parent=0
    #allocation2 [shape = 'u8[4096]{0}', space=vmem, size = 0x1000, scoped, tag = 'input window, operand 0, single buffered']
    #allocation3 [shape = 's32[1]{0}', space=sflag, size = 0x4, scoped, tag = 'scoped memory for tpu_custom_call.1']
    #allocation4 [shape = 's32[1]{0}', space=sflag, size = 0x4, scoped, tag = 'scoped memory for tpu_custom_call.1']
    #allocation5 [shape = 'u8[32768]{0}', space=vmem, size = 0x8000, scoped, tag = 'input window, operand 3, single buffered']
    #allocation6 [shape = 's32[1]{0}', space=sflag, size = 0x4, scoped, tag = 'scoped memory for tpu_custom_call.1']
    #allocation7 [shape = 'u8[4096]{0}', space=vmem, size = 0x1000, scoped, tag = 'output window, operand 0, single buffered']
    %9 = vsyncpa [#allocation3], 0
    %10 = vsyncpa [#allocation6], 0
    %11 = vsyncpa [#allocation4], 0
    // Predicated region
    $region2: #{tpu_custom_call.1} parent=1 // pred_check
      _
    $region3: #{tpu_custom_call.1} parent=1 // pred_check_branch
      %13 = sbr.rel (0) target = $region5
    $region4: #{tpu_custom_call.1} parent=1 // pred_region
      %s15 = ssub.s32 128, 64
      %16 = vsyncadd [#allocation3], %s15
      %s17 = sshll.u32 [#allocation2], 4
      %s18 = int_to_ptr.vmem [resolvable:$true] %s17
      %23 = dma.hbm_to_vmem [thread:$0]  %s0, 64, %s18, [#allocation3], 64, 64, 4
    $region5: #{tpu_custom_call.1} parent=1 // pred_fallthru
      _
    // Predicated region
    $region6: #{tpu_custom_call.1} parent=1 // pred_check
      _
    $region7: #{tpu_custom_call.1} parent=1 // pred_check_branch
      %25 = sbr.rel (0) target = $region9
    $region8: #{tpu_custom_call.1} parent=1 // pred_region
      _
    $region9: #{tpu_custom_call.1} parent=1 // pred_fallthru
      _
    // Predicated region
    $region10: #{tpu_custom_call.1} parent=1 // pred_check
      _
    $region11: #{tpu_custom_call.1} parent=1 // pred_check_branch
      %27 = sbr.rel (0) target = $region13
    $region12: #{tpu_custom_call.1} parent=1 // pred_region
      _
    $region13: #{tpu_custom_call.1} parent=1 // pred_fallthru
      _
    // Predicated region
    $region14: #{tpu_custom_call.1} parent=1 // pred_check
      _
    $region15: #{tpu_custom_call.1} parent=1 // pred_check_branch
      %29 = sbr.rel (0) target = $region17
    $region16: #{tpu_custom_call.1} parent=1 // pred_region
      %s31 = ssub.s32 1024, 1024
      %32 = vsyncadd [#allocation6], %s31
      %s33 = sshll.u32 [#allocation5], 4
      %s34 = int_to_ptr.vmem [resolvable:$true] %s33
      %39 = dma.hbm_to_vmem [thread:$0]  %s3, 1024, %s34, [#allocation6], 64, 64, 4
    $region17: #{tpu_custom_call.1} parent=1 // pred_fallthru
      _
    // Predicated region
    $region18: #{tpu_custom_call.1} parent=1 // pred_check
      _
    $region19: #{tpu_custom_call.1} parent=1 // pred_check_branch
      %41 = sbr.rel (0) target = $region21
    $region20: #{tpu_custom_call.1} parent=1 // pred_region
      %42 = dma.done [#allocation3], 128
    $region21: #{tpu_custom_call.1} parent=1 // pred_fallthru
      _
    // Predicated region
    $region22: #{tpu_custom_call.1} parent=1 // pred_check
      _
    $region23: #{tpu_custom_call.1} parent=1 // pred_check_branch
      %44 = sbr.rel (0) target = $region25
    $region24: #{tpu_custom_call.1} parent=1 // pred_region
      %45 = dma.done [#allocation6], 1024
    $region25: #{tpu_custom_call.1} parent=1 // pred_fallthru
      _
    %v47 = vld [vmem:[#allocation2] sm:$0xff]
    %v48 = vld [vmem:[#allocation5] sm:$0xf]
    %v49 = vld [vmem:[#allocation5 + $0x4] sm:$0xf]
    %v50 = vld [vmem:[#allocation5 + $0x8] sm:$0xf]
    %v51 = vld [vmem:[#allocation5 + $0xc] sm:$0xf]
    %v52 = vld [vmem:[#allocation5 + $0x10] sm:$0xf]
    %v53 = vld [vmem:[#allocation5 + $0x14] sm:$0xf]
    %v54 = vld [vmem:[#allocation5 + $0x18] sm:$0xf]
    %v55 = vld [vmem:[#allocation5 + $0x1c] sm:$0xf]
    %v56 = vld [vmem:[#allocation5 + $0x20] sm:$0xf]
    %v57 = vld [vmem:[#allocation5 + $0x24] sm:$0xf]
    %v58 = vld [vmem:[#allocation5 + $0x28] sm:$0xf]
    %v59 = vld [vmem:[#allocation5 + $0x2c] sm:$0xf]
    %v60 = vld [vmem:[#allocation5 + $0x30] sm:$0xf]
    %v61 = vld [vmem:[#allocation5 + $0x34] sm:$0xf]
    %v62 = vld [vmem:[#allocation5 + $0x38] sm:$0xf]
    %v63 = vld [vmem:[#allocation5 + $0x3c] sm:$0xf]
    %v64 = vpack.c.bf16 %v47, %v47
    %v65 = vunpack.c.l.bf16 %v64
    %v66 = vsub.f32 %v47, %v65
    %v67 = vpack.c.bf16 %v66, %v66
    %v84 = vunpack.c.l.b16 %v48
    %v85 = vunpack.c.l.b16 %v49
    %v86 = vunpack.c.l.b16 %v50
    %v87 = vunpack.c.l.b16 %v51
    %v88 = vunpack.c.l.b16 %v52
    %v89 = vunpack.c.l.b16 %v53
    %v90 = vunpack.c.l.b16 %v54
    %v91 = vunpack.c.l.b16 %v55
    %v92 = vunpack.c.l.b16 %v56
    %v93 = vunpack.c.l.b16 %v57
    %v94 = vunpack.c.l.b16 %v58
    %v95 = vunpack.c.l.b16 %v59
    %v96 = vunpack.c.l.b16 %v60
    %v97 = vunpack.c.l.b16 %v61
    %v98 = vunpack.c.l.b16 %v62
    %v99 = vunpack.c.l.b16 %v63
    %v100 = vpack.c.b16 %v85, %v84
    %v101 = vpack.c.b16 %v87, %v86
    %v102 = vpack.c.b16 %v89, %v88
    %v103 = vpack.c.b16 %v91, %v90
    %v104 = vpack.c.b16 %v93, %v92
    %v105 = vpack.c.b16 %v95, %v94
    %v106 = vpack.c.b16 %v97, %v96
    %v107 = vpack.c.b16 %v99, %v98
    %116 = vmatprep.subr.bf16.mxu0 0
    %117 = vmatpush1.bf16.msra.mxu0 %v100
    %118 = vmatprep.subr.bf16.mxu0 0
    %119 = vmatpush1.bf16.msra.mxu0 %v101
    %120 = vmatprep.subr.bf16.mxu0 0
    %121 = vmatpush1.bf16.msra.mxu0 %v102
    %122 = vmatprep.subr.bf16.mxu0 0
    %123 = vmatpush1.bf16.msra.mxu0 %v103
    %124 = vmatprep.subr.bf16.mxu0 0
    %125 = vmatpush1.bf16.msra.mxu0 %v104
    %126 = vmatprep.subr.bf16.mxu0 0
    %127 = vmatpush1.bf16.msra.mxu0 %v105
    %128 = vmatprep.subr.bf16.mxu0 0
    %129 = vmatpush1.bf16.msra.mxu0 %v106
    %130 = vmatprep.subr.bf16.mxu0 0
    %131 = vmatpush1.bf16.msra.mxu0 %v107
    %132 = vmatprep.subr.bf16.mxu0 0
    %133 = vmatpush1.bf16.msra.mxu0 0
    %134 = vmatprep.subr.bf16.mxu0 0
    %135 = vmatpush1.bf16.msra.mxu0 0
    %136 = vmatprep.subr.bf16.mxu0 0
    %137 = vmatpush1.bf16.msra.mxu0 0
    %138 = vmatprep.subr.bf16.mxu0 0
    %139 = vmatpush1.bf16.msra.mxu0 0
    %140 = vmatprep.subr.bf16.mxu0 0
    %141 = vmatpush1.bf16.msra.mxu0 0
    %142 = vmatprep.subr.bf16.mxu0 0
    %143 = vmatpush1.bf16.msra.mxu0 0
    %144 = vmatprep.subr.bf16.mxu0 0
    %145 = vmatpush1.bf16.msra.mxu0 0
    %146 = vmatprep.subr.bf16.mxu0 0
    %147 = vmatpush1.bf16.msra.mxu0 0
    %148 = vmatprep.mubr.bf16.mxu0 0
    %149 = vmatmul.mubr.bf16.gmra.mrb[0].mxu0 %v67
    %v150 = vpop.f32.mrb[0].mxu0
    %v151 = vadd.f32 0.0, %v150
    %v152 = vpop.f32.mrb[0].mxu0
    %v153 = vpop.f32.mrb[0].mxu0
    %v154 = vpop.f32.mrb[0].mxu0
    %155 = vdwg.mxu0
    %156 = vmatprep.subr.bf16.mxu0 0
    %157 = vmatpush1.bf16.msra.mxu0 %v100
    %158 = vmatprep.subr.bf16.mxu0 0
    %159 = vmatpush1.bf16.msra.mxu0 %v101
    %160 = vmatprep.subr.bf16.mxu0 0
    %161 = vmatpush1.bf16.msra.mxu0 %v102
    %162 = vmatprep.subr.bf16.mxu0 0
    %163 = vmatpush1.bf16.msra.mxu0 %v103
    %164 = vmatprep.subr.bf16.mxu0 0
    %165 = vmatpush1.bf16.msra.mxu0 %v104
    %166 = vmatprep.subr.bf16.mxu0 0
    %167 = vmatpush1.bf16.msra.mxu0 %v105
    %168 = vmatprep.subr.bf16.mxu0 0
    %169 = vmatpush1.bf16.msra.mxu0 %v106
    %170 = vmatprep.subr.bf16.mxu0 0
    %171 = vmatpush1.bf16.msra.mxu0 %v107
    %172 = vmatprep.subr.bf16.mxu0 0
    %173 = vmatpush1.bf16.msra.mxu0 0
    %174 = vmatprep.subr.bf16.mxu0 0
    %175 = vmatpush1.bf16.msra.mxu0 0
    %176 = vmatprep.subr.bf16.mxu0 0
    %177 = vmatpush1.bf16.msra.mxu0 0
    %178 = vmatprep.subr.bf16.mxu0 0
    %179 = vmatpush1.bf16.msra.mxu0 0
    %180 = vmatprep.subr.bf16.mxu0 0
    %181 = vmatpush1.bf16.msra.mxu0 0
    %182 = vmatprep.subr.bf16.mxu0 0
    %183 = vmatpush1.bf16.msra.mxu0 0
    %184 = vmatprep.subr.bf16.mxu0 0
    %185 = vmatpush1.bf16.msra.mxu0 0
    %186 = vmatprep.subr.bf16.mxu0 0
    %187 = vmatpush1.bf16.msra.mxu0 0
    %188 = vmatprep.mubr.bf16.mxu0 0
    %189 = vmatmul.mubr.bf16.gmra.mrb[0].mxu0 %v64
    %v190 = vpop.f32.mrb[0].mxu0
    %v191 = vadd.f32 %v151, %v190
    %v192 = vpop.f32.mrb[0].mxu0
    %v193 = vpop.f32.mrb[0].mxu0
    %v194 = vpop.f32.mrb[0].mxu0
    %195 = vdwg.mxu0
    %v196 = vmul.f32 %v191, 0.03125
    %v197 = vsub.f32 %v47, %v196
    %v198 = vmul.f32 %v197, %v197
    %v199 = vpack.c.bf16 %v198, %v198
    %v200 = vunpack.c.l.bf16 %v199
    %v201 = vsub.f32 %v198, %v200
    %v202 = vpack.c.bf16 %v201, %v201
    %203 = vmatprep.subr.bf16.mxu0 0
    %204 = vmatpush1.bf16.msra.mxu0 %v100
    %205 = vmatprep.subr.bf16.mxu0 0
    %206 = vmatpush1.bf16.msra.mxu0 %v101
    %207 = vmatprep.subr.bf16.mxu0 0
    %208 = vmatpush1.bf16.msra.mxu0 %v102
    %209 = vmatprep.subr.bf16.mxu0 0
    %210 = vmatpush1.bf16.msra.mxu0 %v103
    %211 = vmatprep.subr.bf16.mxu0 0
    %212 = vmatpush1.bf16.msra.mxu0 %v104
    %213 = vmatprep.subr.bf16.mxu0 0
    %214 = vmatpush1.bf16.msra.mxu0 %v105
    %215 = vmatprep.subr.bf16.mxu0 0
    %216 = vmatpush1.bf16.msra.mxu0 %v106
    %217 = vmatprep.subr.bf16.mxu0 0
    %218 = vmatpush1.bf16.msra.mxu0 %v107
    %219 = vmatprep.subr.bf16.mxu0 0
    %220 = vmatpush1.bf16.msra.mxu0 0
    %221 = vmatprep.subr.bf16.mxu0 0
    %222 = vmatpush1.bf16.msra.mxu0 0
    %223 = vmatprep.subr.bf16.mxu0 0
    %224 = vmatpush1.bf16.msra.mxu0 0
    %225 = vmatprep.subr.bf16.mxu0 0
    %226 = vmatpush1.bf16.msra.mxu0 0
    %227 = vmatprep.subr.bf16.mxu0 0
    %228 = vmatpush1.bf16.msra.mxu0 0
    %229 = vmatprep.subr.bf16.mxu0 0
    %230 = vmatpush1.bf16.msra.mxu0 0
    %231 = vmatprep.subr.bf16.mxu0 0
    %232 = vmatpush1.bf16.msra.mxu0 0
    %233 = vmatprep.subr.bf16.mxu0 0
    %234 = vmatpush1.bf16.msra.mxu0 0
    %235 = vmatprep.mubr.bf16.mxu0 0
    %236 = vmatmul.mubr.bf16.gmra.mrb[0].mxu0 %v202
    %v237 = vpop.f32.mrb[0].mxu0
    %v238 = vadd.f32 0.0, %v237
    %v239 = vpop.f32.mrb[0].mxu0
    %v240 = vpop.f32.mrb[0].mxu0
    %v241 = vpop.f32.mrb[0].mxu0
    %242 = vdwg.mxu0
    %243 = vmatprep.subr.bf16.mxu0 0
    %244 = vmatpush1.bf16.msra.mxu0 %v100
    %245 = vmatprep.subr.bf16.mxu0 0
    %246 = vmatpush1.bf16.msra.mxu0 %v101
    %247 = vmatprep.subr.bf16.mxu0 0
    %248 = vmatpush1.bf16.msra.mxu0 %v102
    %249 = vmatprep.subr.bf16.mxu0 0
    %250 = vmatpush1.bf16.msra.mxu0 %v103
    %251 = vmatprep.subr.bf16.mxu0 0
    %252 = vmatpush1.bf16.msra.mxu0 %v104
    %253 = vmatprep.subr.bf16.mxu0 0
    %254 = vmatpush1.bf16.msra.mxu0 %v105
    %255 = vmatprep.subr.bf16.mxu0 0
    %256 = vmatpush1.bf16.msra.mxu0 %v106
    %257 = vmatprep.subr.bf16.mxu0 0
    %258 = vmatpush1.bf16.msra.mxu0 %v107
    %259 = vmatprep.subr.bf16.mxu0 0
    %260 = vmatpush1.bf16.msra.mxu0 0
    %261 = vmatprep.subr.bf16.mxu0 0
    %262 = vmatpush1.bf16.msra.mxu0 0
    %263 = vmatprep.subr.bf16.mxu0 0
    %264 = vmatpush1.bf16.msra.mxu0 0
    %265 = vmatprep.subr.bf16.mxu0 0
    %266 = vmatpush1.bf16.msra.mxu0 0
    %267 = vmatprep.subr.bf16.mxu0 0
    %268 = vmatpush1.bf16.msra.mxu0 0
    %269 = vmatprep.subr.bf16.mxu0 0
    %270 = vmatpush1.bf16.msra.mxu0 0
    %271 = vmatprep.subr.bf16.mxu0 0
    %272 = vmatpush1.bf16.msra.mxu0 0
    %273 = vmatprep.subr.bf16.mxu0 0
    %274 = vmatpush1.bf16.msra.mxu0 0
    %275 = vmatprep.mubr.bf16.mxu0 0
    %276 = vmatmul.mubr.bf16.gmra.mrb[0].mxu0 %v199
    %v277 = vpop.f32.mrb[0].mxu0
    %v278 = vadd.f32 %v238, %v277
    %v279 = vpop.f32.mrb[0].mxu0
    %v280 = vpop.f32.mrb[0].mxu0
    %v281 = vpop.f32.mrb[0].mxu0
    %282 = vdwg.mxu0
    %v283 = vmul.f32 %v278, 0.032258064
    %v284 = vrsqrt.pop %v283
    %v285 = vmul.f32 %v283, %v284
    %vm286 = vcmp.eq.f32.partialorder %v283, inf
    %v287 = vsel %vm286, %v283, %v285
    %vm288 = vcmp.eq.f32.partialorder %v283, 0.0
    %v289 = vand.u32 %v283, 2147483648
    %v290 = vsel %vm288, %v289, %v287
    %v291 = vadd.f32 %v290, 1e-12
    %v292 = vrcp.pop %v291
    %v293 = vld [vmem:[%s1] sm:$0x1]
    %v294 = vmul.f32 %v197, %v292
    %v296 = vlaneseq
    %v297 = vshrl.u32 %v296, 7
    %v298 = vsub.s32 0, %v297
    %v299 = vrot.slane %v293, %v298
    %v301 = vmul.f32 %v299, %v294
    %v302 = vld [vmem:[%s2] sm:$0x1]
    %v304 = vlaneseq
    %v305 = vshrl.u32 %v304, 7
    %v306 = vsub.s32 0, %v305
    %v307 = vrot.slane %v302, %v306
    %v309 = vadd.f32 %v301, %v307
    %310 = vst [vmem:[#allocation7] sm:$0xff] %v309
    // Predicated region
    $region26: #{tpu_custom_call.1} parent=1 // pred_check
      _
    $region27: #{tpu_custom_call.1} parent=1 // pred_check_branch
      %312 = sbr.rel (0) target = $region29
    $region28: #{tpu_custom_call.1} parent=1 // pred_region
      %s314 = ssub.s32 128, 64
      %315 = vsyncadd [#allocation4], %s314
      %s316 = sshll.u32 [#allocation7], 4
      %s317 = int_to_ptr.vmem [resolvable:$true] %s316
      %322 = dma.vmem_to_hbm [thread:$0]  %s317, 64, %s4, [#allocation4], 64, 64, 4
    $region29: #{tpu_custom_call.1} parent=1 // pred_fallthru
      _
    // Predicated region
    $region30: #{tpu_custom_call.1} parent=1 // pred_check
      _
    $region31: #{tpu_custom_call.1} parent=1 // pred_check_branch
      %324 = sbr.rel (0) target = $region33
    $region32: #{tpu_custom_call.1} parent=1 // pred_region
      %325 = dma.done [#allocation4], 128
    $region33: #{tpu_custom_call.1} parent=1 // pred_fallthru
      _
    %326 = vsyncpa [#allocation3], 1
    %327 = vsyncpa [#allocation6], 1
    %328 = vsyncpa [#allocation4], 1

</llo_original>
